<compile_context>
chip_gen: v7x
topology: tpu7x:2x2x1
jax: 0.10.0
libtpu: 0.0.40
codegen_flags: <defaults>
</compile_context>

<pallas_src>
import jax
import jax.numpy as jnp
from jax.experimental import pallas as pl
from jax.experimental.pallas import tpu as pltpu


def _conv2_kernel(w_ref, a_ref, o_ref):
    """Weighted channel reduction for one (TE, T_HW) output tile.

    w_ref: (TE, C)        softmax-normalized weights (f32); block index is
                          constant along the spatial grid axis, so it stays
                          VMEM-resident across the inner loop.
    a_ref: (TE, C, T_HW)  input tile: edge-types outer, channels on
                          sublanes, spatial on lanes.
    o_ref: (TE, T_HW)     lane-dense output tile.
    """
    w = w_ref[...][:, :, None]                                 # (TE, C, 1)
    # Dense load + broadcast multiply (VPU) + sublane reduce over C (XLU).
    # Accumulation happens in f32 via type promotion against the f32 weights.
    o_ref[...] = jnp.sum(a_ref[...] * w, axis=1).astype(o_ref.dtype)


# Per-generation (max spatial tile, scoped-VMEM limit to request).
_GEN_CONFIG = {
    "v5e": (16384, 64 << 20),   # 128 MiB physical, 16 MiB scoped default
    "v6e": (49152, 96 << 20),   # 128 MiB physical, 32 MiB scoped default
    "v7x": (32768, 48 << 20),   # 64 MiB physical,  32 MiB scoped default
    "unknown": (8192, None),    # fits every default scoped limit
}


def _tpu_generation():
    try:
        kind = jax.devices()[0].device_kind.lower()
    except Exception:
        return "unknown"
    if "v5 lite" in kind or "v5e" in kind or "v5lite" in kind:
        return "v5e"
    if "v6" in kind:
        return "v6e"
    if "v7" in kind or "7x" in kind:
        return "v7x"
    return "unknown"


def _pick_hw_tile(HW, cap):
    """Largest lane tile <= cap that is a multiple of 128, preferring one
    that divides HW (avoids a mostly-masked last tile per grid row)."""
    if HW <= cap:
        return HW                       # full dim always satisfies the rule
    cap = max(128, (cap // 128) * 128)  # round any override down to 128s
    if HW % 128 == 0:
        n = HW // 128
        m = cap // 128
        lo = max(1, m // 2)             # don't shrink below cap/2 just to divide
        while m >= lo:
            if n % m == 0:
                return m * 128
            m -= 1
    return cap


def conv2_forward(A, weight, *, hw_tile=None):
    """A: (E, C, H, W), weight: (E, C, 1, 1) -> (E, H, W)."""
    E, C, H, W = A.shape
    HW = H * W
    a3 = A.reshape(E, C, HW)            # contiguity-preserving (free) reshape

    # Hoisted softmax over channels (dim=1 of the (E, C, 1, 1) weight), f32.
    w_sm = jax.nn.softmax(weight.reshape(E, C).astype(jnp.float32), axis=1)

    gen = _tpu_generation()
    cap, vmem_limit = _GEN_CONFIG.get(gen, _GEN_CONFIG["unknown"])
    if hw_tile is not None:
        cap = max(128, (int(hw_tile) // 128) * 128)

    # Edge-type (sublane) tile: 8 when possible; for E < 8 the block equals
    # the full dim; for E not a multiple of 8 the last block is masked.
    TE = min(E, 8)
    grid_e = pl.cdiv(E, TE)

    T_HW = _pick_hw_tile(HW, cap)
    grid_hw = pl.cdiv(HW, T_HW)

    # v7x has 2 TensorCores: keep >= 2 grid steps so the "parallel" axes can
    # be sharded across both cores.
    if gen == "v7x" and grid_e * grid_hw == 1 and HW >= 256:
        T_HW = max(128, ((-(-HW // 2)) + 127) // 128 * 128)
        grid_hw = pl.cdiv(HW, T_HW)

    grid = (grid_e, grid_hw)

    itemsize = jnp.dtype(A.dtype).itemsize
    cost = pl.CostEstimate(
        flops=2 * E * C * HW,
        transcendentals=0,
        bytes_accessed=(E * C * HW + E * HW) * itemsize + E * C * 4,
    )

    out = pl.pallas_call(
        _conv2_kernel,
        out_shape=jax.ShapeDtypeStruct((E, HW), A.dtype),
        grid_spec=pltpu.PrefetchScalarGridSpec(
            num_scalar_prefetch=0,
            grid=grid,
            in_specs=[
                # Tiny weight tile, VMEM-resident across the spatial axis.
                pl.BlockSpec((TE, C), lambda i, j: (i, 0)),
                pl.BlockSpec((TE, C, T_HW), lambda i, j: (i, 0, j)),
            ],
            out_specs=pl.BlockSpec((TE, T_HW), lambda i, j: (i, j)),
        ),
        compiler_params=pltpu.CompilerParams(
            dimension_semantics=("parallel", "parallel"),
            vmem_limit_bytes=vmem_limit,
        ),
        cost_estimate=cost,
    )(w_sm, a3)
    return out.reshape(E, H, W)


class Conv2Pallas:
    """Deterministic re-implementation of the PyTorch Conv2 module."""

    def __init__(self, in_channels, out_channels):
        self.in_channels = in_channels
        self.out_channels = 1
        # nn.init.constant_(self.weight, 0.2)
        self.weight = jnp.full((out_channels, in_channels, 1, 1), 0.2,
                               dtype=jnp.float32)
        self.bias = None
        # `scale` exists on the module but is unused in forward().
        self.scale = jnp.array([0.1], dtype=jnp.float32)

    def __call__(self, A):
        return conv2_forward(A, self.weight)


if __name__ == "__main__":
    # Small shapes consistent with the module: E edge-types, C=5 channels
    # (the "[1, 5, 1, 1]" conv in the docstring), 16x16 spatial.
    E, C, H, W = 4, 5, 16, 16
    key = jax.random.PRNGKey(0)
    A = jax.random.normal(key, (E, C, H, W), dtype=jnp.float32)

    mod = Conv2Pallas(in_channels=C, out_channels=E)
    out = jax.block_until_ready(mod(A))

    # Pure-JAX reference for correctness.
    sm = jax.nn.softmax(mod.weight, axis=1)          # (E, C, 1, 1)
    ref = jnp.sum(A * sm, axis=1)                    # (E, H, W)
    assert out.shape == ref.shape == (E, H, W)
    assert jnp.allclose(out, ref, atol=1e-5, rtol=1e-5)

    print("KERNEL_OK")
</pallas_src>

<mosaic_0001>
module attributes {stable_mosaic.version = 11 : i64} {
  func.func @_conv2_kernel(%arg0: i32, %arg1: i32, %arg2: memref<4x5xf32, #tpu.memory_space<vmem>>, %arg3: memref<4x5x256xf32, #tpu.memory_space<vmem>>, %arg4: memref<4x256xf32, #tpu.memory_space<vmem>>) attributes {dimension_semantics = [#tpu.dimension_semantics<parallel>, #tpu.dimension_semantics<parallel>], iteration_bounds = array<i64: 1, 1>, scalar_prefetch = 0 : i64, scratch_operands = 0 : i64, tpu.core_type = #tpu.core_type<tc>, window_params = [{transform_indices = @transform_0, window_bounds = array<i64: 4, 5>}, {transform_indices = @transform_1, window_bounds = array<i64: 4, 5, 256>}, {transform_indices = @transform_2, window_bounds = array<i64: 4, 256>}]} {
    %c0 = arith.constant 0 : index
    %c0_0 = arith.constant 0 : index
    %0 = vector.load %arg2[%c0, %c0_0] : memref<4x5xf32, #tpu.memory_space<vmem>>, vector<4x5xf32>
    %1 = vector.shape_cast %0 : vector<4x5xf32> to vector<4x5x1xf32>
    %c0_1 = arith.constant 0 : index
    %c0_2 = arith.constant 0 : index
    %c0_3 = arith.constant 0 : index
    %2 = vector.load %arg3[%c0_1, %c0_2, %c0_3] : memref<4x5x256xf32, #tpu.memory_space<vmem>>, vector<4x5x256xf32>
    %3 = vector.broadcast %1 : vector<4x5x1xf32> to vector<4x5x256xf32>
    %4 = arith.mulf %2, %3 : vector<4x5x256xf32>
    %cst = arith.constant dense<0.000000e+00> : vector<4x256xf32>
    %5 = vector.multi_reduction <add>, %4, %cst [1] : vector<4x5x256xf32> to vector<4x256xf32>
    %c0_4 = arith.constant 0 : index
    %c0_5 = arith.constant 0 : index
    %6 = vector.load %arg4[%c0_4, %c0_5] : memref<4x256xf32, #tpu.memory_space<vmem>>, vector<4x256xf32>
    tpu.vector_store %arg4[%c0_4, %c0_5], %5 {strides = array<i32>} : memref<4x256xf32, #tpu.memory_space<vmem>>, vector<4x256xf32>,
    return
  }
  func.func @transform_0(%arg0: i32, %arg1: i32) -> (i32, i32) {
    %c0_i32 = arith.constant 0 : i32
    %c0_i32_0 = arith.constant 0 : i32
    return %arg0, %c0_i32 : i32, i32
  }
  func.func @transform_1(%arg0: i32, %arg1: i32) -> (i32, i32, i32) {
    %c0_i32 = arith.constant 0 : i32
    %c0_i32_0 = arith.constant 0 : i32
    return %arg0, %c0_i32, %arg1 : i32, i32, i32
  }
  func.func @transform_2(%arg0: i32, %arg1: i32) -> (i32, i32) {
    %c0_i32 = arith.constant 0 : i32
    return %arg0, %arg1 : i32, i32
  }
}

</mosaic_0001>

<llo_original>
// kernel: tpu_custom_call.1
$region0: #{tpu_custom_call.1}
  #allocation0 [shape = 'u32[]', space=smem, size = 0x4, offset = 0x4, fixed_abs, tag = 'smem constant byte address 0x4 - core index']
  #allocation1 [shape = 'u32[144,128]{1,0:T(1,128)}', space=vmem, size = 0x12000, scoped, tag = 'internal scratch']
  %s0 = inlined_call_operand.vmem [shape: f32[4,5], index: 0, kind: input, shape index: {}]
  %s1 = inlined_call_operand.vmem [shape: f32[4,5,256], index: 1, kind: input, shape index: {}]
  %s2 = inlined_call_operand.hbm [shape: f32[4,256], index: 2, kind: output, shape index: {}]
  %s3 = sld [smem:[#allocation0]]
  $region18: #{tpu_custom_call.1} parent=0
    _
  %s5 = ssub.s32 1, %s3
  %s6 = scalar_select 0, %s5, %s3
  $region1: #{tpu_custom_call.1} parent=0
    #allocation2 [shape = 'u8[4096]{0}', space=vmem, size = 0x1000, scoped, tag = 'output window, operand 0, single buffered']
    #allocation3 [shape = 's32[1]{0}', space=sflag, size = 0x4, scoped, tag = 'scoped memory for tpu_custom_call.1']
    %7 = vsyncpa [#allocation3], 0
    // Predicated region
    $region2: #{tpu_custom_call.1} parent=1 // pred_check
      _
    $region3: #{tpu_custom_call.1} parent=1 // pred_check_branch
      %9 = sbr.rel (0) target = $region5
    $region4: #{tpu_custom_call.1} parent=1 // pred_region
      _
    $region5: #{tpu_custom_call.1} parent=1 // pred_fallthru
      _
    // Predicated region
    $region6: #{tpu_custom_call.1} parent=1 // pred_check
      _
    $region7: #{tpu_custom_call.1} parent=1 // pred_check_branch
      %11 = sbr.rel (0) target = $region9
    $region8: #{tpu_custom_call.1} parent=1 // pred_region
      _
    $region9: #{tpu_custom_call.1} parent=1 // pred_fallthru
      _
    %v12 = vld [vmem:[%s0] sm:$0xf]
    %v13 = vlaneseq
    %v14 = vshrl.u32 %v13, 7
    %v15 = vsub.s32 0, %v14
    %v16 = vrot.slane %v12, %v15
    %18 = vbcast.lane.b32.xlu0 %v16, 256
    %v19 = vpop.permute.xlu0 %18
    %v20 = vlaneseq
    %v21 = vshrl.u32 %v20, 7
    %v22 = vsub.s32 1, %v21
    %v23 = vrot.slane %v12, %v22
    %25 = vbcast.lane.b32.xlu0 %v23, 256
    %v26 = vpop.permute.xlu0 %25
    %v27 = vlaneseq
    %v28 = vshrl.u32 %v27, 7
    %v29 = vsub.s32 2, %v28
    %v30 = vrot.slane %v12, %v29
    %32 = vbcast.lane.b32.xlu0 %v30, 256
    %v33 = vpop.permute.xlu0 %32
    %v34 = vlaneseq
    %v35 = vshrl.u32 %v34, 7
    %v36 = vsub.s32 3, %v35
    %v37 = vrot.slane %v12, %v36
    %39 = vbcast.lane.b32.xlu0 %v37, 256
    %v40 = vpop.permute.xlu0 %39
    %v41 = vld [vmem:[%s1] sm:$0x1f]
    %v42 = vld [vmem:[%s1 + $0x8] sm:$0x1f]
    %v43 = vld [vmem:[%s1 + $0x10] sm:$0x1f]
    %v44 = vld [vmem:[%s1 + $0x18] sm:$0x1f]
    %v45 = vld [vmem:[%s1 + $0x20] sm:$0x1f]
    %v46 = vld [vmem:[%s1 + $0x28] sm:$0x1f]
    %v47 = vld [vmem:[%s1 + $0x30] sm:$0x1f]
    %v48 = vld [vmem:[%s1 + $0x38] sm:$0x1f]
    %v49 = vmul.f32 %v41, %v19
    %v50 = vmul.f32 %v42, %v19
    %v51 = vmul.f32 %v43, %v26
    %v52 = vmul.f32 %v44, %v26
    %v53 = vmul.f32 %v45, %v33
    %v54 = vmul.f32 %v46, %v33
    %v55 = vmul.f32 %v47, %v40
    %v56 = vmul.f32 %v48, %v40
    %vm57 = vcmask 1044480
    %v58 = vsel %vm57, %v49, 0.0
    %v59 = vrot.slane %v58, 4
    %v60 = vadd.f32 %v58, %v59
    %v61 = vrot.slane %v60, 2
    %v62 = vadd.f32 %v60, %v61
    %v63 = vrot.slane %v62, 1
    %v64 = vadd.f32 %v62, %v63
    %v65 = vsel %vm57, %v50, 0.0
    %v66 = vrot.slane %v65, 4
    %v67 = vadd.f32 %v65, %v66
    %v68 = vrot.slane %v67, 2
    %v69 = vadd.f32 %v67, %v68
    %v70 = vrot.slane %v69, 1
    %v71 = vadd.f32 %v69, %v70
    %v72 = vsel %vm57, %v51, 0.0
    %v73 = vrot.slane %v72, 4
    %v74 = vadd.f32 %v72, %v73
    %v75 = vrot.slane %v74, 2
    %v76 = vadd.f32 %v74, %v75
    %v77 = vrot.slane %v76, 1
    %v78 = vadd.f32 %v76, %v77
    %v79 = vsel %vm57, %v52, 0.0
    %v80 = vrot.slane %v79, 4
    %v81 = vadd.f32 %v79, %v80
    %v82 = vrot.slane %v81, 2
    %v83 = vadd.f32 %v81, %v82
    %v84 = vrot.slane %v83, 1
    %v85 = vadd.f32 %v83, %v84
    %v86 = vsel %vm57, %v53, 0.0
    %v87 = vrot.slane %v86, 4
    %v88 = vadd.f32 %v86, %v87
    %v89 = vrot.slane %v88, 2
    %v90 = vadd.f32 %v88, %v89
    %v91 = vrot.slane %v90, 1
    %v92 = vadd.f32 %v90, %v91
    %v93 = vsel %vm57, %v54, 0.0
    %v94 = vrot.slane %v93, 4
    %v95 = vadd.f32 %v93, %v94
    %v96 = vrot.slane %v95, 2
    %v97 = vadd.f32 %v95, %v96
    %v98 = vrot.slane %v97, 1
    %v99 = vadd.f32 %v97, %v98
    %v100 = vsel %vm57, %v55, 0.0
    %v101 = vrot.slane %v100, 4
    %v102 = vadd.f32 %v100, %v101
    %v103 = vrot.slane %v102, 2
    %v104 = vadd.f32 %v102, %v103
    %v105 = vrot.slane %v104, 1
    %v106 = vadd.f32 %v104, %v105
    %v107 = vsel %vm57, %v56, 0.0
    %v108 = vrot.slane %v107, 4
    %v109 = vadd.f32 %v107, %v108
    %v110 = vrot.slane %v109, 2
    %v111 = vadd.f32 %v109, %v110
    %v112 = vrot.slane %v111, 1
    %v113 = vadd.f32 %v111, %v112
    %v122 = vcombine.low %v64, %v71
    %v123 = vcombine.low %v78, %v85
    %v124 = vcombine.low %v92, %v99
    %v125 = vcombine.low %v106, %v113
    %v126 = vrot.slane %v123, 7
    %vm127 = vcmask 1041409
    %v128 = vsel %vm127, %v126, %v122
    %vm129 = vcmask 1045509
    %v130 = vsel %vm129, %v126, %v128
    %v131 = vrot.slane %v124, 6
    %vm132 = vcmask 1042434
    %v133 = vsel %vm132, %v131, %v130
    %vm134 = vcmask 1046534
    %v135 = vsel %vm134, %v131, %v133
    %v136 = vrot.slane %v125, 5
    %vm137 = vcmask 1043459
    %v138 = vsel %vm137, %v136, %v135
    %vm139 = vcmask 1047559
    %v140 = vsel %vm139, %v136, %v138
    %142 = vst [vmem:[#allocation2] sm:$0xff] %v140
    // Predicated region
    $region10: #{tpu_custom_call.1} parent=1 // pred_check
      _
    $region11: #{tpu_custom_call.1} parent=1 // pred_check_branch
      %144 = sbr.rel (0) target = $region13
    $region12: #{tpu_custom_call.1} parent=1 // pred_region
      %s146 = ssub.s32 128, 128
      %147 = vsyncadd [#allocation3], %s146
      %s149 = sshll.u32 [#allocation2], 4
      %s150 = int_to_ptr.vmem [resolvable:$true] %s149
      %152 = dma.vmem_to_hbm [thread:$0]  %s150, 128, %s2, [#allocation3]
    $region13: #{tpu_custom_call.1} parent=1 // pred_fallthru
      _
    // Predicated region
    $region14: #{tpu_custom_call.1} parent=1 // pred_check
      _
    $region15: #{tpu_custom_call.1} parent=1 // pred_check_branch
      %154 = sbr.rel (0) target = $region17
    $region16: #{tpu_custom_call.1} parent=1 // pred_region
      %155 = dma.done [#allocation3], 128
    $region17: #{tpu_custom_call.1} parent=1 // pred_fallthru
      _
    %156 = vsyncpa [#allocation3], 1

</llo_original>
